<compile_context>
chip_gen: v7x
topology: tpu7x:2x2x1
jax: 0.10.0
libtpu: 0.0.40
codegen_flags: <defaults>
</compile_context>

<pallas_src>
import functools

import jax
import jax.numpy as jnp
from jax.experimental import pallas as pl
from jax.experimental.pallas import tpu as pltpu

_LANE = 128
_SUBLANE = 8
_MAX_TILE_SUBLANES = 2048   # 2048*128*4B = 1 MiB per f32 input block


# ----------------------------- Pallas kernel ----------------------------------------------
def _soft_iou_kernel(pred_ref, label_ref, out_ref, inter_ref, union_ref, *,
                     from_sigmoid, ignore_label, k_true, need_mask):
    kb = pl.program_id(1)                      # reduction-axis block index (last grid axis)

    @pl.when(kb == 0)
    def _init():
        inter_ref[...] = jnp.zeros_like(inter_ref)
        union_ref[...] = jnp.zeros_like(union_ref)

    pred = pred_ref[0].astype(jnp.float32)     # (ts, 128), native dtype -> f32 in-register
    lab = label_ref[0].astype(jnp.float32)     # (ts, 128)
    valid = (lab != ignore_label).astype(jnp.float32)

    if need_mask:                              # mask the pad region against the true K
        ts, lane = pred.shape
        row = jax.lax.broadcasted_iota(jnp.int32, (ts, lane), 0)
        col = jax.lax.broadcasted_iota(jnp.int32, (ts, lane), 1)
        elem = (kb * ts + row) * lane + col    # flat element index within this batch row
        valid = jnp.where(elem < k_true, valid, 0.0)

    p = pred if from_sigmoid else jax.nn.sigmoid(pred)

    # sublane reduce per tile -> (1, 128) lane accumulators (f32)
    inter_ref[...] += jnp.sum(p * lab * valid, axis=0, keepdims=True)
    union_ref[...] += jnp.sum(jnp.maximum(p, lab) * valid, axis=0, keepdims=True)

    @pl.when(kb == pl.num_programs(1) - 1)
    def _finalize():
        inter = jnp.sum(inter_ref[...], axis=1, keepdims=True)        # (1, 1)
        union = jnp.sum(union_ref[...], axis=1, keepdims=True)        # (1, 1)
        loss = 1.0 - inter * pl.reciprocal(union + 1e-8, approx=False)
        out_ref[...] = loss.reshape(1, 1, 1)


# ----------------------------- wrapper -----------------------------------------------------
def soft_iou(pred, label, *, from_sigmoid=False, ignore_label=-1):
    """JAX/Pallas port of SoftIoU.forward.

    pred: (B, C, H, W) logits (or probabilities if from_sigmoid). label is reshaped to
    pred.shape (label.view(pred.size())).  Returns the per-batch loss, shape (B,), float32.
    Inputs keep their native dtypes all the way into the kernel.
    """
    pred = jnp.asarray(pred)
    label = jnp.asarray(label).reshape(pred.shape)      # label.view(pred.size())

    B = pred.shape[0]
    K = int(pred.size) // B

    # Lane-dense layout: (B, K) -> (B, R_pad, 128); tile sublanes ts is a multiple of 8.
    R = -(-K // _LANE)
    ts = min(_MAX_TILE_SUBLANES, -(-R // _SUBLANE) * _SUBLANE)
    R_pad = -(-R // ts) * ts
    K_pad = R_pad * _LANE
    need_mask = K_pad != K

    pred2 = pred.reshape(B, K)
    label2 = label.reshape(B, K)
    if need_mask:
        pred2 = jnp.pad(pred2, ((0, 0), (0, K_pad - K)))
        label2 = jnp.pad(label2, ((0, 0), (0, K_pad - K)))   # pad value irrelevant: iota-masked
    pred3 = pred2.reshape(B, R_pad, _LANE)
    label3 = label2.reshape(B, R_pad, _LANE)

    kernel = functools.partial(
        _soft_iou_kernel,
        from_sigmoid=from_sigmoid,
        ignore_label=float(ignore_label),
        k_true=K,
        need_mask=need_mask,
    )

    out = pl.pallas_call(
        kernel,
        out_shape=jax.ShapeDtypeStruct((B, 1, 1), jnp.float32),
        grid=(B, R_pad // ts),                                     # reduction axis LAST
        in_specs=[
            pl.BlockSpec((1, ts, _LANE), lambda b, k: (b, k, 0)),
            pl.BlockSpec((1, ts, _LANE), lambda b, k: (b, k, 0)),
        ],
        out_specs=pl.BlockSpec((1, 1, 1), lambda b, k: (b, 0, 0)),
        scratch_shapes=[
            pltpu.VMEM((1, _LANE), jnp.float32),                   # inter accumulator
            pltpu.VMEM((1, _LANE), jnp.float32),                   # union accumulator
        ],
        compiler_params=pltpu.CompilerParams(
            dimension_semantics=("parallel", "arbitrary")),
    )(pred3, label3)
    return out.reshape(B)


# ----------------------------- pure-JAX reference (for self-check) ------------------------
def _ref_soft_iou(pred, label, *, from_sigmoid=False, ignore_label=-1):
    pred = jnp.asarray(pred, jnp.float32)
    label = jnp.asarray(label, jnp.float32).reshape(pred.shape)
    w = (label != ignore_label).astype(jnp.float32)
    p = pred if from_sigmoid else jax.nn.sigmoid(pred)
    axes = tuple(range(1, pred.ndim))
    num = jnp.sum(p * label * w, axis=axes)
    den = jnp.sum(jnp.maximum(p, label) * w, axis=axes) + 1e-8
    return 1.0 - num / den


# ----------------------------- driver ------------------------------------------------------
if __name__ == "__main__":
    key = jax.random.PRNGKey(0)

    # Case 1: logits, K = C*H*W = 1024 (multiple of 128) — no-padding path.
    B, C, H, W = 2, 4, 16, 16
    k1, k2, k3, key = jax.random.split(key, 4)
    pred = jax.random.normal(k1, (B, C, H, W), jnp.float32)
    label = (jax.random.uniform(k2, (B, C, H, W)) > 0.5).astype(jnp.float32)
    label = jnp.where(jax.random.uniform(k3, (B, C, H, W)) < 0.1, -1.0, label)  # ignored px

    out = jax.block_until_ready(soft_iou(pred, label))
    ref = jax.block_until_ready(_ref_soft_iou(pred, label))
    assert out.shape == (B,), out.shape
    assert jnp.allclose(out, ref, atol=1e-5, rtol=1e-5), (out, ref)

    # Case 2: from_sigmoid probabilities, ragged K = 273 — exercises pad + in-kernel mask.
    B2, C2, H2, W2 = 2, 1, 13, 21
    k4, k5, k6, key = jax.random.split(key, 4)
    prob = jax.random.uniform(k4, (B2, C2, H2, W2), jnp.float32)
    label2 = (jax.random.uniform(k5, (B2, C2, H2, W2)) > 0.5).astype(jnp.float32)
    label2 = jnp.where(jax.random.uniform(k6, (B2, C2, H2, W2)) < 0.1, -1.0, label2)

    out2 = jax.block_until_ready(soft_iou(prob, label2, from_sigmoid=True))
    ref2 = jax.block_until_ready(_ref_soft_iou(prob, label2, from_sigmoid=True))
    assert out2.shape == (B2,), out2.shape
    assert jnp.allclose(out2, ref2, atol=1e-5, rtol=1e-5), (out2, ref2)

    print("KERNEL_OK")
</pallas_src>

<mosaic_0001>
module attributes {stable_mosaic.version = 11 : i64} {
  func.func @_soft_iou_kernel(%arg0: i32, %arg1: i32, %arg2: memref<1x8x128xf32, #tpu.memory_space<vmem>>, %arg3: memref<1x8x128xf32, #tpu.memory_space<vmem>>, %arg4: memref<1x1x1xf32, #tpu.memory_space<vmem>>, %arg5: memref<1x128xf32, #tpu.memory_space<vmem>>, %arg6: memref<1x128xf32, #tpu.memory_space<vmem>>) attributes {dimension_semantics = [#tpu.dimension_semantics<parallel>, #tpu.dimension_semantics<arbitrary>], iteration_bounds = array<i64: 2, 1>, scalar_prefetch = 0 : i64, scratch_operands = 2 : i64, tpu.core_type = #tpu.core_type<tc>, window_params = [{transform_indices = @transform_0, window_bounds = array<i64: 1, 8, 128>}, {transform_indices = @transform_1, window_bounds = array<i64: 1, 8, 128>}, {transform_indices = @transform_2, window_bounds = array<i64: 1, 1, 1>}]} {
    %c0_i32 = arith.constant 0 : i32
    %0 = arith.cmpi eq, %arg1, %c0_i32 : i32
    %1 = arith.extui %0 : i1 to i32
    %c0_i32_0 = arith.constant 0 : i32
    %2 = arith.cmpi ne, %1, %c0_i32_0 : i32
    scf.if %2 {
      %cst_19 = arith.constant 0.000000e+00 : f32
      %33 = vector.broadcast %cst_19 : f32 to vector<1x128xf32>
      %c0_20 = arith.constant 0 : index
      %c0_21 = arith.constant 0 : index
      %34 = vector.load %arg5[%c0_20, %c0_21] : memref<1x128xf32, #tpu.memory_space<vmem>>, vector<1x128xf32>
      tpu.vector_store %arg5[%c0_20, %c0_21], %33 {strides = array<i32>} : memref<1x128xf32, #tpu.memory_space<vmem>>, vector<1x128xf32>,
      %cst_22 = arith.constant 0.000000e+00 : f32
      %35 = vector.broadcast %cst_22 : f32 to vector<1x128xf32>
      %c0_23 = arith.constant 0 : index
      %c0_24 = arith.constant 0 : index
      %36 = vector.load %arg6[%c0_23, %c0_24] : memref<1x128xf32, #tpu.memory_space<vmem>>, vector<1x128xf32>
      tpu.vector_store %arg6[%c0_23, %c0_24], %35 {strides = array<i32>} : memref<1x128xf32, #tpu.memory_space<vmem>>, vector<1x128xf32>,
    } else {
    }
    %c0 = arith.constant 0 : index
    %c0_1 = arith.constant 0 : index
    %c0_2 = arith.constant 0 : index
    %3 = vector.load %arg2[%c0, %c0_1, %c0_2] : memref<1x8x128xf32, #tpu.memory_space<vmem>>, vector<1x8x128xf32>
    %4 = vector.shape_cast %3 : vector<1x8x128xf32> to vector<8x128xf32>
    %c0_3 = arith.constant 0 : index
    %c0_4 = arith.constant 0 : index
    %c0_5 = arith.constant 0 : index
    %5 = vector.load %arg3[%c0_3, %c0_4, %c0_5] : memref<1x8x128xf32, #tpu.memory_space<vmem>>, vector<1x8x128xf32>
    %6 = vector.shape_cast %5 : vector<1x8x128xf32> to vector<8x128xf32>
    %cst = arith.constant -1.000000e+00 : f32
    %7 = vector.broadcast %cst : f32 to vector<8x128xf32>
    %8 = arith.cmpf one, %6, %7 : vector<8x128xf32>
    %9 = arith.extui %8 : vector<8x128xi1> to vector<8x128xi32>
    %10 = arith.sitofp %9 : vector<8x128xi32> to vector<8x128xf32>
    %11 = arith.negf %4 : vector<8x128xf32>
    %12 = math.exp %11 : vector<8x128xf32>
    %cst_6 = arith.constant 1.000000e+00 : f32
    %13 = vector.broadcast %cst_6 : f32 to vector<8x128xf32>
    %14 = arith.addf %13, %12 : vector<8x128xf32>
    %15 = arith.divf %13, %14 : vector<8x128xf32>
    %c0_7 = arith.constant 0 : index
    %c0_8 = arith.constant 0 : index
    %16 = vector.load %arg5[%c0_7, %c0_8] : memref<1x128xf32, #tpu.memory_space<vmem>>, vector<1x128xf32>
    %17 = arith.mulf %15, %6 : vector<8x128xf32>
    %18 = arith.mulf %17, %10 : vector<8x128xf32>
    %cst_9 = arith.constant dense<0.000000e+00> : vector<128xf32>
    %19 = vector.multi_reduction <add>, %18, %cst_9 [0] : vector<8x128xf32> to vector<128xf32>
    %20 = vector.shape_cast %19 : vector<128xf32> to vector<1x128xf32>
    %21 = arith.addf %16, %20 : vector<1x128xf32>
    %c0_10 = arith.constant 0 : index
    %c0_11 = arith.constant 0 : index
    %22 = vector.load %arg5[%c0_10, %c0_11] : memref<1x128xf32, #tpu.memory_space<vmem>>, vector<1x128xf32>
    tpu.vector_store %arg5[%c0_10, %c0_11], %21 {strides = array<i32>} : memref<1x128xf32, #tpu.memory_space<vmem>>, vector<1x128xf32>,
    %c0_12 = arith.constant 0 : index
    %c0_13 = arith.constant 0 : index
    %23 = vector.load %arg6[%c0_12, %c0_13] : memref<1x128xf32, #tpu.memory_space<vmem>>, vector<1x128xf32>
    %24 = arith.maximumf %15, %6 : vector<8x128xf32>
    %25 = arith.mulf %24, %10 : vector<8x128xf32>
    %cst_14 = arith.constant dense<0.000000e+00> : vector<128xf32>
    %26 = vector.multi_reduction <add>, %25, %cst_14 [0] : vector<8x128xf32> to vector<128xf32>
    %27 = vector.shape_cast %26 : vector<128xf32> to vector<1x128xf32>
    %28 = arith.addf %23, %27 : vector<1x128xf32>
    %c0_15 = arith.constant 0 : index
    %c0_16 = arith.constant 0 : index
    %29 = vector.load %arg6[%c0_15, %c0_16] : memref<1x128xf32, #tpu.memory_space<vmem>>, vector<1x128xf32>
    tpu.vector_store %arg6[%c0_15, %c0_16], %28 {strides = array<i32>} : memref<1x128xf32, #tpu.memory_space<vmem>>, vector<1x128xf32>,
    %c0_i32_17 = arith.constant 0 : i32
    %30 = arith.cmpi eq, %arg1, %c0_i32_17 : i32
    %31 = arith.extui %30 : i1 to i32
    %c0_i32_18 = arith.constant 0 : i32
    %32 = arith.cmpi ne, %31, %c0_i32_18 : i32
    scf.if %32 {
      %c0_19 = arith.constant 0 : index
      %c0_20 = arith.constant 0 : index
      %33 = vector.load %arg5[%c0_19, %c0_20] : memref<1x128xf32, #tpu.memory_space<vmem>>, vector<1x128xf32>
      %cst_21 = arith.constant dense<0.000000e+00> : vector<1xf32>
      %34 = vector.multi_reduction <add>, %33, %cst_21 [1] : vector<1x128xf32> to vector<1xf32>
      %35 = vector.shape_cast %34 : vector<1xf32> to vector<1x1xf32>
      %c0_22 = arith.constant 0 : index
      %c0_23 = arith.constant 0 : index
      %36 = vector.load %arg6[%c0_22, %c0_23] : memref<1x128xf32, #tpu.memory_space<vmem>>, vector<1x128xf32>
      %cst_24 = arith.constant dense<0.000000e+00> : vector<1xf32>
      %37 = vector.multi_reduction <add>, %36, %cst_24 [1] : vector<1x128xf32> to vector<1xf32>
      %38 = vector.shape_cast %37 : vector<1xf32> to vector<1x1xf32>
      %cst_25 = arith.constant 9.99999993E-9 : f32
      %39 = vector.broadcast %cst_25 : f32 to vector<1x1xf32>
      %40 = arith.addf %38, %39 : vector<1x1xf32>
      %41 = tpu.reciprocal %40 : vector<1x1xf32> -> vector<1x1xf32>
      %42 = arith.mulf %35, %41 : vector<1x1xf32>
      %cst_26 = arith.constant 1.000000e+00 : f32
      %43 = vector.broadcast %cst_26 : f32 to vector<1x1xf32>
      %44 = arith.subf %43, %42 : vector<1x1xf32>
      %45 = vector.shape_cast %44 : vector<1x1xf32> to vector<1x1x1xf32>
      %c0_27 = arith.constant 0 : index
      %c0_28 = arith.constant 0 : index
      %c0_29 = arith.constant 0 : index
      %46 = vector.load %arg4[%c0_27, %c0_28, %c0_29] : memref<1x1x1xf32, #tpu.memory_space<vmem>>, vector<1x1x1xf32>
      tpu.vector_store %arg4[%c0_27, %c0_28, %c0_29], %45 {strides = array<i32>} : memref<1x1x1xf32, #tpu.memory_space<vmem>>, vector<1x1x1xf32>,
    } else {
    }
    return
  }
  func.func @transform_0(%arg0: i32, %arg1: i32) -> (i32, i32, i32) {
    %c0_i32 = arith.constant 0 : i32
    %c0_i32_0 = arith.constant 0 : i32
    return %arg0, %arg1, %c0_i32 : i32, i32, i32
  }
  func.func @transform_1(%arg0: i32, %arg1: i32) -> (i32, i32, i32) {
    %c0_i32 = arith.constant 0 : i32
    %c0_i32_0 = arith.constant 0 : i32
    return %arg0, %arg1, %c0_i32 : i32, i32, i32
  }
  func.func @transform_2(%arg0: i32, %arg1: i32) -> (i32, i32, i32) {
    %c0_i32 = arith.constant 0 : i32
    %c0_i32_0 = arith.constant 0 : i32
    %c0_i32_1 = arith.constant 0 : i32
    return %arg0, %c0_i32, %c0_i32_0 : i32, i32, i32
  }
}

</mosaic_0001>

<llo_original>
// kernel: tpu_custom_call.1
$region0: #{tpu_custom_call.1}
  #allocation0 [shape = 'u32[]', space=smem, size = 0x4, offset = 0x4, fixed_abs, tag = 'smem constant byte address 0x4 - core index']
  #allocation1 [shape = 'u32[144,128]{1,0:T(1,128)}', space=vmem, size = 0x12000, scoped, tag = 'internal scratch']
  #allocation2 [shape = 'f32[1,128]{1,0:T(1,128)}', space=vmem, size = 0x200, scoped, tag = 'scratch operand']
  #allocation3 [shape = 'f32[1,128]{1,0:T(1,128)}', space=vmem, size = 0x200, scoped, tag = 'scratch operand']
  %s0 = inlined_call_operand.hbm [shape: f32[2,8,128], index: 0, kind: input, shape index: {}]
  %s1 = inlined_call_operand.hbm [shape: f32[2,8,128], index: 1, kind: input, shape index: {}]
  %s2 = inlined_call_operand.vmem [shape: f32[2,1,1], index: 2, kind: output, shape index: {}]
  %s3 = sld [smem:[#allocation0]]
  $region57: #{tpu_custom_call.1} parent=0
    _
  %s5 = ssub.s32 1, %s3
  %s6 = scalar_select 0, %s5, %s3
  $region1: #{tpu_custom_call.1} parent=0
    #allocation4 [shape = 'u8[8192]{0}', space=vmem, size = 0x2000, scoped, tag = 'input window, operand 0']
    #allocation5 [shape = 's32[2]{0}', space=sflag, size = 0x8, scoped, tag = 'scoped memory for tpu_custom_call.1']
    #allocation6 [shape = 'u8[8192]{0}', space=vmem, size = 0x2000, scoped, tag = 'input window, operand 1']
    #allocation7 [shape = 's32[2]{0}', space=sflag, size = 0x8, scoped, tag = 'scoped memory for tpu_custom_call.1']
    %7 = vsyncpa [#allocation5], 0
    %s8 = scalar_lea.sflag [#allocation5], 1
    %9 = vsyncpa %s8, 0
    %10 = vsyncpa [#allocation7], 0
    %s11 = scalar_lea.sflag [#allocation7], 1
    %12 = vsyncpa %s11, 0
    loop: start=0, step=1, limit=4
    $region2: #{tpu_custom_call.1} parent=1 // loop_pre_header
      _
    $region3: #{tpu_custom_call.1} parent=1 // loop_header
      %s14 = sphi 0, %s18
      %p15 = scmp.ge.s32.totalorder %s14, 4
      %s21 = sphi 0, %s33
      %s22 = sphi 0, %s29
      %s23 = sphi 0, %s21
      %s24 = sphi 0, %s22
      %s25 = sphi 0, %s23
      %s26 = sphi 0, %s24
      %s38 = sphi 0, %s40
      %s41 = sphi 0, %s38
      %s42 = sphi 0, %s41
      %s58 = sphi 0, %s42
      %s66 = sphi 0, %s68
      %s69 = sphi 0, %s66
      %s70 = sphi 0, %s69
      %s86 = sphi 0, %s70
      %s92 = sphi 0, %s94
      %s95 = sphi 0, %s92
      %s96 = sphi 0, %s95
      %s112 = sphi 0, %s96
    $region4: #{tpu_custom_call.1} parent=1 // loop_header_branch
      %17 = sbr.rel (%p15) target = $region8
    $region5: #{tpu_custom_call.1} parent=1 // loop_body
      %s19 = ssub.s32 %s14, 1
      %s20 = ssub.s32 %s14, 2
      %s27 = sadd.s32 1, %s22
      %p28 = scmp.ge.s32.totalorder %s27, 1
      %s29 = scalar_select %p28, 0, %s27
      %s30 = sadd.s32 1, %s21
      %s31 = scalar_select %p28, %s30, %s21
      %p32 = scmp.ge.s32.totalorder %s31, 2
      %s33 = scalar_select %p32, 0, %s31
      %s34 = ssub.s32 %s21, %s33
      %s35 = ssub.s32 %s22, %s29
      %s36 = sor.u32 %s34, %s35
      %p37 = scmp.eq.s32.totalorder %s36, 0
      %s39 = sadd.s32 %s38, 1
      %s40 = scalar_select %p37, %s38, %s39
      %p43 = pneg %p37
      %p44 = scmp.eq.s32.totalorder %s14, 1
      %p45 = por %p43, %p44
      %p46 = scmp.ne.s32.totalorder %s38, %s41
      %p47 = scmp.eq.s32.totalorder %s14, 0
      %p48 = por %p46, %p47
      %p49 = scmp.ne.s32.totalorder %s38, %s41
      %p50 = scmp.eq.s32.totalorder %s19, 1
      %p51 = por %p49, %p50
      %p52 = scmp.ne.s32.totalorder %s41, %s42
      %p53 = scmp.eq.s32.totalorder %s19, 0
      %p54 = por %p52, %p53
      %p55 = scmp.ne.s32.totalorder %s41, %s42
      %p56 = scmp.eq.s32.totalorder %s20, 1
      %p57 = por %p55, %p56
      %p59 = scmp.ne.s32.totalorder %s42, %s58
      %p60 = scmp.eq.s32.totalorder %s20, 0
      %p61 = por %p59, %p60
      %s62 = ssub.s32 %s21, %s33
      %s63 = ssub.s32 %s22, %s29
      %s64 = sor.u32 %s62, %s63
      %p65 = scmp.eq.s32.totalorder %s64, 0
      %s67 = sadd.s32 %s66, 1
      %s68 = scalar_select %p65, %s66, %s67
      %p71 = pneg %p65
      %p72 = scmp.eq.s32.totalorder %s14, 1
      %p73 = por %p71, %p72
      %p74 = scmp.ne.s32.totalorder %s66, %s69
      %p75 = scmp.eq.s32.totalorder %s14, 0
      %p76 = por %p74, %p75
      %p77 = scmp.ne.s32.totalorder %s66, %s69
      %p78 = scmp.eq.s32.totalorder %s19, 1
      %p79 = por %p77, %p78
      %p80 = scmp.ne.s32.totalorder %s69, %s70
      %p81 = scmp.eq.s32.totalorder %s19, 0
      %p82 = por %p80, %p81
      %p83 = scmp.ne.s32.totalorder %s69, %s70
      %p84 = scmp.eq.s32.totalorder %s20, 1
      %p85 = por %p83, %p84
      %p87 = scmp.ne.s32.totalorder %s70, %s86
      %p88 = scmp.eq.s32.totalorder %s20, 0
      %p89 = por %p87, %p88
      %s90 = ssub.s32 %s21, %s33
      %p91 = scmp.eq.s32.totalorder %s90, 0
      %s93 = sadd.s32 %s92, 1
      %s94 = scalar_select %p91, %s92, %s93
      %p97 = pneg %p91
      %p98 = scmp.eq.s32.totalorder %s14, 1
      %p99 = por %p97, %p98
      %p100 = scmp.ne.s32.totalorder %s92, %s95
      %p101 = scmp.eq.s32.totalorder %s14, 0
      %p102 = por %p100, %p101
      %p103 = scmp.ne.s32.totalorder %s92, %s95
      %p104 = scmp.eq.s32.totalorder %s19, 1
      %p105 = por %p103, %p104
      %p106 = scmp.ne.s32.totalorder %s95, %s96
      %p107 = scmp.eq.s32.totalorder %s19, 0
      %p108 = por %p106, %p107
      %p109 = scmp.ne.s32.totalorder %s95, %s96
      %p110 = scmp.eq.s32.totalorder %s20, 1
      %p111 = por %p109, %p110
      %p113 = scmp.ne.s32.totalorder %s96, %s112
      %p114 = scmp.eq.s32.totalorder %s20, 0
      %p115 = por %p113, %p114
      %p116 = scmp.le.s32.totalorder 1, %s14
      %p117 = scmp.lt.s32.totalorder %s14, 3
      %p118 = pnand %p116, %p117
      %p119 = pneg %p118
      // Predicated region
      $region9: #{tpu_custom_call.1} parent=5 // pred_check
        _
      $region10: #{tpu_custom_call.1} parent=5 // pred_check_branch
        %121 = sbr.rel (%p118) target = $region12
      $region11: #{tpu_custom_call.1} parent=5 // pred_region
        %s122 = ssub.s32 %s14, 1
      $region12: #{tpu_custom_call.1} parent=5 // pred_fallthru
        _
      %p123 = scmp.lt.s32.totalorder %s14, 2
      // Predicated region
      $region13: #{tpu_custom_call.1} parent=5 // pred_check
        %p124 = pneg %p123
      $region14: #{tpu_custom_call.1} parent=5 // pred_check_branch
        %126 = sbr.rel (%p124) target = $region16
      $region15: #{tpu_custom_call.1} parent=5 // pred_region
        // Predicated region
        $region17: #{tpu_custom_call.1} parent=15 // pred_check
          %p127 = pneg %p48
        $region18: #{tpu_custom_call.1} parent=15 // pred_check_branch
          %129 = sbr.rel (%p127) target = $region20
        $region19: #{tpu_custom_call.1} parent=15 // pred_region
          %s130 = sand.u32 %s38, 1
          %s131 = scalar_lea.sflag [#allocation5], %s130
          %s132 = sand.u32 %s38, 1
          %s133 = smul.addr %s132, 8
          %s134 = scalar_lea.vmem [#allocation4], %s133
          %s136 = ssub.s32 128, 128
          %137 = vsyncadd %s131, %s136
          %s138 = sadd.s32 %s22, %s21
          %s139 = smul.addr %s138, 128
          %s140 = scalar_lea.hbm %s0, %s139
          %s142 = sshll.u32 %s134, 4
          %s143 = int_to_ptr.vmem [resolvable:$true] %s142
          %145 = dma.hbm_to_vmem [thread:$0]  %s140, 128, %s143, %s131
        $region20: #{tpu_custom_call.1} parent=15 // pred_fallthru
          _
        // Predicated region
        $region21: #{tpu_custom_call.1} parent=15 // pred_check
          %p146 = pneg %p76
        $region22: #{tpu_custom_call.1} parent=15 // pred_check_branch
          %148 = sbr.rel (%p146) target = $region24
        $region23: #{tpu_custom_call.1} parent=15 // pred_region
          %s149 = sand.u32 %s66, 1
          %s150 = scalar_lea.sflag [#allocation7], %s149
          %s151 = sand.u32 %s66, 1
          %s152 = smul.addr %s151, 8
          %s153 = scalar_lea.vmem [#allocation6], %s152
          %s155 = ssub.s32 128, 128
          %156 = vsyncadd %s150, %s155
          %s157 = sadd.s32 %s22, %s21
          %s158 = smul.addr %s157, 128
          %s159 = scalar_lea.hbm %s1, %s158
          %s161 = sshll.u32 %s153, 4
          %s162 = int_to_ptr.vmem [resolvable:$true] %s161
          %164 = dma.hbm_to_vmem [thread:$0]  %s159, 128, %s162, %s150
        $region24: #{tpu_custom_call.1} parent=15 // pred_fallthru
          _
      $region16: #{tpu_custom_call.1} parent=5 // pred_fallthru
        _
      %p165 = scmp.le.s32.totalorder 1, %s14
      %p166 = scmp.lt.s32.totalorder %s14, 3
      %p167 = pnand %p165, %p166
      %p168 = pneg %p167
      // Predicated region
      $region25: #{tpu_custom_call.1} parent=5 // pred_check
        _
      $region26: #{tpu_custom_call.1} parent=5 // pred_check_branch
        %170 = sbr.rel (%p167) target = $region28
      $region27: #{tpu_custom_call.1} parent=5 // pred_region
        %s171 = ssub.s32 %s14, 1
        %s172 = sand.u32 %s41, 1
        %s173 = scalar_lea.sflag [#allocation5], %s172
        %s174 = sand.u32 %s41, 1
        %s175 = smul.addr %s174, 8
        %s176 = scalar_lea.vmem [#allocation4], %s175
        // Predicated region
        $region29: #{tpu_custom_call.1} parent=27 // pred_check
          %p177 = pneg %p54
        $region30: #{tpu_custom_call.1} parent=27 // pred_check_branch
          %179 = sbr.rel (%p177) target = $region32
        $region31: #{tpu_custom_call.1} parent=27 // pred_region
          %180 = dma.done %s173, 128
        $region32: #{tpu_custom_call.1} parent=27 // pred_fallthru
          _
        %s181 = sand.u32 %s69, 1
        %s182 = scalar_lea.sflag [#allocation7], %s181
        %s183 = sand.u32 %s69, 1
        %s184 = smul.addr %s183, 8
        %s185 = scalar_lea.vmem [#allocation6], %s184
        // Predicated region
        $region33: #{tpu_custom_call.1} parent=27 // pred_check
          %p186 = pneg %p82
        $region34: #{tpu_custom_call.1} parent=27 // pred_check_branch
          %188 = sbr.rel (%p186) target = $region36
        $region35: #{tpu_custom_call.1} parent=27 // pred_region
          %189 = dma.done %s182, 128
        $region36: #{tpu_custom_call.1} parent=27 // pred_fallthru
          _
        %s190 = sand.u32 %s41, 1
        %s191 = scalar_lea.sflag [#allocation5], %s190
        %s192 = sand.u32 %s41, 1
        %s193 = smul.addr %s192, 8
        %s194 = scalar_lea.vmem [#allocation4], %s193
        %p195 = pneg %p54
        %p196 = pneg %p51
        %s197 = sand.u32 %s69, 1
        %s198 = scalar_lea.sflag [#allocation7], %s197
        %s199 = sand.u32 %s69, 1
        %s200 = smul.addr %s199, 8
        %s201 = scalar_lea.vmem [#allocation6], %s200
        %p202 = pneg %p82
        %p203 = pneg %p79
        %p204 = pneg %p108
        %p205 = pneg %p105
        %p206 = scmp.lt.s32.totalorder %s23, 1
        %s207 = scalar_select %p206, %s23, 1
        %s208 = scalar_lea.vmem %s2, %s207
        %p209 = scmp.lt.s32.totalorder %s23, 1
        %s210 = scalar_select %p209, %s23, 1
        %s211 = scalar_lea.vmem %s2, %s210
        %p212 = scmp.eq.s32.totalorder %s24, 0
        // Predicated region
        $region37: #{tpu_custom_call.1} parent=27 // pred_check
          %p213 = pneg %p212
        $region38: #{tpu_custom_call.1} parent=27 // pred_check_branch
          %215 = sbr.rel (%p213) target = $region40
        $region39: #{tpu_custom_call.1} parent=27 // pred_region
          %216 = vst [vmem:[#allocation2] sm:$0x1] 0.0
          %217 = vst [vmem:[#allocation3] sm:$0x1] 0.0
        $region40: #{tpu_custom_call.1} parent=27 // pred_fallthru
          _
        %v218 = vld [vmem:[%s176] sm:$0xff]
        %v219 = vld [vmem:[%s185] sm:$0xff]
        %vm220 = vcmp.ne.f32.partialorder %v219, -1.0
        %v221 = vsel %vm220, 1, 0
        %v222 = vcvt.s32.f32 %v221
        %v223 = vxor.u32 %v218, 2147483648
        %v224 = vmul.f32 %v223, 1.442695
        %v225 = vpow.pop %v224
        %v226 = vadd.f32 %v225, 1.0
        %v227 = vrcp.pop %v226
        %v228 = vmul.f32 1.0, %v227
        %v229 = vld [vmem:[#allocation2] sm:$0x1]
        %v230 = vmul.f32 %v228, %v219
        %v231 = vmul.f32 %v230, %v222
        %v232 = vrot.slane %v231, 4
        %v233 = vadd.f32 %v231, %v232
        %v234 = vrot.slane %v233, 2
        %v235 = vadd.f32 %v233, %v234
        %v236 = vrot.slane %v235, 1
        %v237 = vadd.f32 %v235, %v236
        %v238 = vadd.f32 %v229, %v237
        %239 = vst [vmem:[#allocation2] sm:$0x1] %v238
        %v240 = vld [vmem:[#allocation3] sm:$0x1]
        %v241 = vmax.f32 %v228, %v219
        %v242 = vmul.f32 %v241, %v222
        %v243 = vrot.slane %v242, 4
        %v244 = vadd.f32 %v242, %v243
        %v245 = vrot.slane %v244, 2
        %v246 = vadd.f32 %v244, %v245
        %v247 = vrot.slane %v246, 1
        %v248 = vadd.f32 %v246, %v247
        %v249 = vadd.f32 %v240, %v248
        %250 = vst [vmem:[#allocation3] sm:$0x1] %v249
        // Predicated region
        $region41: #{tpu_custom_call.1} parent=27 // pred_check
          %p251 = pneg %p212
        $region42: #{tpu_custom_call.1} parent=27 // pred_check_branch
          %253 = sbr.rel (%p251) target = $region44
        $region43: #{tpu_custom_call.1} parent=27 // pred_region
          %v254 = vld [vmem:[#allocation2] sm:$0x1]
          %vm255 = vcmask 1040384
          %v256 = vsel %vm255, %v254, 0.0
          %257 = vadd.xlane.f32.xlu0 %v256
          %v258 = vpop.xlane.xlu0 %257
          %v259 = vld [vmem:[#allocation3] sm:$0x1]
          %v260 = vsel %vm255, %v259, 0.0
          %261 = vadd.xlane.f32.xlu0 %v260
          %v262 = vpop.xlane.xlu0 %261
          %v263 = vadd.f32 %v262, 1e-08
          %v264 = vrcp.pop %v263
          %v265 = vmul.f32 %v258, %v264
          %v266 = vsub.f32 1.0, %v265
          %vm267 = vcmask 0
          %268 = vst.msk [vmem:[%s211] sm:$0x1] %vm267, %v266
        $region44: #{tpu_custom_call.1} parent=27 // pred_fallthru
          _
        %p269 = scmp.lt.s32.totalorder %s23, 1
        %s270 = scalar_select %p269, %s23, 1
        %s271 = scalar_lea.vmem %s2, %s270
        // Predicated region
        $region45: #{tpu_custom_call.1} parent=27 // pred_check
          %p272 = pneg %p105
        $region46: #{tpu_custom_call.1} parent=27 // pred_check_branch
          %274 = sbr.rel (%p272) target = $region48
        $region47: #{tpu_custom_call.1} parent=27 // pred_region
          _
        $region48: #{tpu_custom_call.1} parent=27 // pred_fallthru
          _
      $region28: #{tpu_custom_call.1} parent=5 // pred_fallthru
        _
      %p275 = scmp.le.s32.totalorder 2, %s14
      // Predicated region
      $region49: #{tpu_custom_call.1} parent=5 // pred_check
        %p276 = pneg %p275
      $region50: #{tpu_custom_call.1} parent=5 // pred_check_branch
        %278 = sbr.rel (%p276) target = $region52
      $region51: #{tpu_custom_call.1} parent=5 // pred_region
        %s279 = ssub.s32 %s14, 2
        // Predicated region
        $region53: #{tpu_custom_call.1} parent=51 // pred_check
          %p280 = pneg %p111
        $region54: #{tpu_custom_call.1} parent=51 // pred_check_branch
          %282 = sbr.rel (%p280) target = $region56
        $region55: #{tpu_custom_call.1} parent=51 // pred_region
          %p283 = scmp.lt.s32.totalorder %s25, 1
          %s284 = scalar_select %p283, %s25, 1
          %s285 = scalar_lea.vmem %s2, %s284
        $region56: #{tpu_custom_call.1} parent=51 // pred_fallthru
          _
      $region52: #{tpu_custom_call.1} parent=5 // pred_fallthru
        _
    $region6: #{tpu_custom_call.1} parent=1 // loop_footer
      %s18 = sadd.s32 1, %s14
    $region7: #{tpu_custom_call.1} parent=1 // loop_footer_branch
      %13 = sbr.rel target = $region3
    $region8: #{tpu_custom_call.1} parent=1 // loop_exit
      _
    %286 = vsyncpa [#allocation5], 1
    %s287 = scalar_lea.sflag [#allocation5], 1
    %288 = vsyncpa %s287, 1
    %289 = vsyncpa [#allocation7], 1
    %s290 = scalar_lea.sflag [#allocation7], 1
    %291 = vsyncpa %s290, 1

</llo_original>
